<compile_context>
chip_gen: v6e
topology: v6e:2x2x1
jax: 0.10.0
libtpu: 0.0.40
codegen_flags: <defaults>
</compile_context>

<pallas_src>
import functools

import numpy as np
import jax
import jax.numpy as jnp
from jax.experimental import pallas as pl
from jax.experimental.pallas import tpu as pltpu

EPS = 1e-5


def _round_up(n, m):
    return ((n + m - 1) // m) * m


def _tap_mask_np(H, W):
    """(9, H*W) f32: 1 where a 3x3 tap reads a real pixel, 0 in the conv halo."""
    n = np.arange(H * W)
    y, x = n // W, n % W
    rows = []
    for oy in (-1, 0, 1):
        for ox in (-1, 0, 1):
            valid = (y + oy >= 0) & (y + oy < H) & (x + ox >= 0) & (x + ox < W)
            rows.append(valid.astype(np.float32))
    return np.stack(rows, axis=0)


def _vgg_block_kernel(x_ref, m1_ref, w1_ref, g1_ref, bt1_ref,
                      m2_ref, w2_ref, g2_ref, bt2_ref, out_ref,
                      *, W, HW, mxu_dtype):
    B = x_ref.shape[0]
    BHW = B * HW
    inv_n = jnp.float32(1.0 / BHW)

    def conv3x3(img, mask_slab, w2d):
        # img: (C_pad, B*HW) f32, channels on sublanes, batch*spatial on lanes.
        # Build the im2col slab (9*C_pad, B*HW) from XLU lane rotations of the
        # whole batched image (wrap-around / cross-image reads land exactly
        # where the halo mask zeroes them), apply the mask with one aligned
        # multiply, cast only the MXU operand, and issue a single matmul.
        taps = []
        for oy in (-1, 0, 1):
            for ox in (-1, 0, 1):
                d = oy * W + ox
                if d == 0:
                    taps.append(img)                                   # centre tap
                else:
                    taps.append(pltpu.roll(img, shift=(-d) % BHW, axis=1))
        patches = jnp.concatenate(taps, axis=0)                        # (9*C_pad, B*HW)
        patches = (patches * mask_slab).astype(mxu_dtype)              # halo zeroing (f32 VPU)
        # (Co_pad, 9*C_pad) @ (9*C_pad, B*HW) -> (Co_pad, B*HW), f32 accumulation.
        return jnp.dot(w2d, patches, preferred_element_type=jnp.float32)

    def bn_relu(acc, gamma, beta):
        # Training-mode BN (biased variance over N*H*W), two-pass statistics for
        # numerical robustness, gamma/beta folded into one scale/shift FMA, ReLU.
        mean = jnp.sum(acc, axis=1, keepdims=True) * inv_n             # (C, 1)
        cen = acc - mean
        var = jnp.sum(cen * cen, axis=1, keepdims=True) * inv_n        # (C, 1)
        scale = gamma * jax.lax.rsqrt(var + EPS)
        return jnp.maximum(cen * scale + beta, 0.0)

    # Lane-concatenate the batch: each (C_pad, HW) piece lands at a lane offset
    # that is a multiple of HW (itself a multiple of 128) -> aligned copies.
    img = jnp.concatenate([x_ref[b] for b in range(B)], axis=1)        # (Cin_pad, B*HW)

    y1 = bn_relu(conv3x3(img, m1_ref[...], w1_ref[...]), g1_ref[...], bt1_ref[...])
    y2 = bn_relu(conv3x3(y1, m2_ref[...], w2_ref[...]), g2_ref[...], bt2_ref[...])

    for b in range(B):
        # Static, 128-aligned lane slice; full-sublane (C_pad) lane-dense store.
        out_ref[b] = y2[:, b * HW:(b + 1) * HW].astype(out_ref.dtype)


@functools.partial(jax.jit, static_argnames=("mxu_dtype",))
def vgg_block(x_nchw, w1_oihw, b1, g1, bt1, w2_oihw, b2, g2, bt2,
              *, mxu_dtype=jnp.bfloat16):
    """Pallas VGGBlock forward. x: (B, Cin, H, W) f32 -> (B, Cout, H, W) f32.

    Conv biases b1/b2 are accepted for interface parity with the PyTorch module
    but are cancelled exactly by training-mode BN mean subtraction, so they are
    not sent to the kernel (exact only under training-mode BN).
    """
    del b1, b2
    B, Cin, H, W = x_nchw.shape
    Cmid, Cout = w1_oihw.shape[0], w2_oihw.shape[0]
    HW = H * W

    # Pad channel counts to multiples of 8 so im2col tap blocks, the matmul M
    # dim and the output store are all full-sublane (16 would be ideal for bf16
    # sublane packing at production channel counts).
    cin_p, cmid_p, cout_p = (_round_up(c, 8) for c in (Cin, Cmid, Cout))

    # NCHW consumed directly: channels on sublanes, flattened spatial on lanes.
    x = jnp.pad(x_nchw.astype(jnp.float32).reshape(B, Cin, HW),
                ((0, 0), (0, cin_p - Cin), (0, 0)))

    def pack_w(w, ci_p, co_p):
        # OIHW -> (Co, ky, kx, Ci) -> zero-pad -> (Co_p, 9*Ci_p): tap-major,
        # channel-minor, matching the kernel's im2col slab row order.
        co, ci = w.shape[0], w.shape[1]
        w = jnp.transpose(w, (0, 2, 3, 1)).astype(jnp.float32)
        w = jnp.pad(w, ((0, co_p - co), (0, 0), (0, 0), (0, ci_p - ci)))
        return w.reshape(co_p, 9 * ci_p).astype(mxu_dtype)

    def pack_affine(v, c_p):
        return jnp.pad(v.astype(jnp.float32), (0, c_p - v.shape[0])).reshape(c_p, 1)

    w1_2d = pack_w(w1_oihw, cin_p, cmid_p)
    w2_2d = pack_w(w2_oihw, cmid_p, cout_p)
    g1r, bt1r = pack_affine(g1, cmid_p), pack_affine(bt1, cmid_p)
    g2r, bt2r = pack_affine(g2, cout_p), pack_affine(bt2, cout_p)

    # Full mask slabs (9*C_pad, B*HW), center-tap rows all ones: one aligned
    # multiply per conv instead of per-tap broadcasts.  Constants, folded by XLA.
    mask_b = np.tile(_tap_mask_np(H, W), (1, B))                       # (9, B*HW)
    m1 = jnp.asarray(np.repeat(mask_b, cin_p, axis=0))                 # (9*Cin_p,  B*HW)
    m2 = jnp.asarray(np.repeat(mask_b, cmid_p, axis=0))                # (9*Cmid_p, B*HW)

    vmem = pl.BlockSpec(memory_space=pltpu.MemorySpace.VMEM)

    # TODO(synk): production tiling -- grid over batch / H row-blocks (1-row halo,
    # full W rows kept on lanes; never tile the lane axis under the roll-based
    # im2col), dimension_semantics=("parallel", ...) so both v7x TensorCores are
    # used, two-phase BN (per-tile sum/sumsq accumulated in scratch with pl.when
    # init/finalize, or a stats pallas_call + an apply pallas_call), and tile
    # sizes re-derived for v7x's 64 MiB VMEM (the im2col slab is 9x the
    # activation tile in f32, 4.5x in bf16) with lane tiles >= 512 that are
    # multiples of 128 (v5e MXU) / 256 (v6e/v7x MXU).  At this demo size
    # (B*HW = 512 lanes, < 2 MiB live) one monolithic invocation is the right
    # tiling.
    out_flat = pl.pallas_call(
        functools.partial(_vgg_block_kernel, W=W, HW=HW, mxu_dtype=mxu_dtype),
        out_shape=jax.ShapeDtypeStruct((B, cout_p, HW), jnp.float32),
        in_specs=[vmem] * 9,
        out_specs=vmem,
        compiler_params=pltpu.CompilerParams(vmem_limit_bytes=32 * 1024 * 1024),
    )(x, m1, w1_2d, g1r, bt1r, m2, w2_2d, g2r, bt2r)

    return out_flat[:, :Cout, :].reshape(B, Cout, H, W)


# ---------------------------------------------------------------------------
# Pure-JAX reference (NCHW, matches PyTorch semantics) for a correctness check.
# ---------------------------------------------------------------------------
def _ref_forward(x, w1, b1, g1, bt1, w2, b2, g2, bt2):
    def conv(x, w, b):
        y = jax.lax.conv_general_dilated(
            x, w, window_strides=(1, 1), padding="SAME",
            dimension_numbers=("NCHW", "OIHW", "NCHW"))
        return y + b[None, :, None, None]

    def bn_relu(y, g, bt):
        m = y.mean(axis=(0, 2, 3), keepdims=True)
        v = ((y - m) ** 2).mean(axis=(0, 2, 3), keepdims=True)
        y = (y - m) / jnp.sqrt(v + EPS) * g[None, :, None, None] + bt[None, :, None, None]
        return jnp.maximum(y, 0.0)

    y = bn_relu(conv(x, w1, b1), g1, bt1)
    y = bn_relu(conv(y, w2, b2), g2, bt2)
    return y


if __name__ == "__main__":
    B, Cin, Cmid, Cout, H, W = 2, 4, 8, 4, 16, 16

    key = jax.random.PRNGKey(0)
    ks = jax.random.split(key, 9)
    x = jax.random.normal(ks[0], (B, Cin, H, W), jnp.float32)

    # Deterministic parameter init (PyTorch param shapes; synthetic values).
    w1 = jax.random.normal(ks[1], (Cmid, Cin, 3, 3), jnp.float32) * 0.1
    b1 = jax.random.normal(ks[2], (Cmid,), jnp.float32) * 0.1
    g1 = 1.0 + 0.1 * jax.random.normal(ks[3], (Cmid,), jnp.float32)
    bt1 = 0.1 * jax.random.normal(ks[4], (Cmid,), jnp.float32)

    w2 = jax.random.normal(ks[5], (Cout, Cmid, 3, 3), jnp.float32) * 0.1
    b2 = jax.random.normal(ks[6], (Cout,), jnp.float32) * 0.1
    g2 = 1.0 + 0.1 * jax.random.normal(ks[7], (Cout,), jnp.float32)
    bt2 = 0.1 * jax.random.normal(ks[8], (Cout,), jnp.float32)

    ref = _ref_forward(x, w1, b1, g1, bt1, w2, b2, g2, bt2)

    # f32-MXU variant: tight structural check (roll/mask/im2col order, BN math).
    out_f32 = jax.block_until_ready(
        vgg_block(x, w1, b1, g1, bt1, w2, b2, g2, bt2, mxu_dtype=jnp.float32))
    assert out_f32.shape == (B, Cout, H, W), out_f32.shape
    err_f32 = float(jnp.max(jnp.abs(out_f32 - ref)))
    assert err_f32 < 1e-3, err_f32

    # Default (production) variant: bf16 MXU operands, f32 accumulation and BN.
    out = jax.block_until_ready(vgg_block(x, w1, b1, g1, bt1, w2, b2, g2, bt2))
    assert out.shape == (B, Cout, H, W), out.shape
    err_bf16 = float(jnp.max(jnp.abs(out - ref)))
    assert err_bf16 < 1e-1, err_bf16

    print("KERNEL_OK")
</pallas_src>

<mosaic_0001>
module attributes {stable_mosaic.version = 11 : i64} {
  func.func @_vgg_block_kernel(%arg0: memref<2x8x256xf32, #tpu.memory_space<vmem>>, %arg1: memref<72x512xf32, #tpu.memory_space<vmem>>, %arg2: memref<8x72xf32, #tpu.memory_space<vmem>>, %arg3: memref<8x1xf32, #tpu.memory_space<vmem>>, %arg4: memref<8x1xf32, #tpu.memory_space<vmem>>, %arg5: memref<72x512xf32, #tpu.memory_space<vmem>>, %arg6: memref<8x72xf32, #tpu.memory_space<vmem>>, %arg7: memref<8x1xf32, #tpu.memory_space<vmem>>, %arg8: memref<8x1xf32, #tpu.memory_space<vmem>>, %arg9: memref<2x8x256xf32, #tpu.memory_space<vmem>>) attributes {dimension_semantics = [], scalar_prefetch = 0 : i64, scratch_operands = 0 : i64, tpu.core_type = #tpu.core_type<tc>} {
    %c0 = arith.constant 0 : index
    %c0_0 = arith.constant 0 : index
    %c0_1 = arith.constant 0 : index
    %0 = vector.load %arg0[%c0, %c0_0, %c0_1] : memref<2x8x256xf32, #tpu.memory_space<vmem>>, vector<1x8x256xf32>
    %1 = vector.shape_cast %0 : vector<1x8x256xf32> to vector<8x256xf32>
    %c1 = arith.constant 1 : index
    %c0_2 = arith.constant 0 : index
    %c0_3 = arith.constant 0 : index
    %2 = vector.load %arg0[%c1, %c0_2, %c0_3] : memref<2x8x256xf32, #tpu.memory_space<vmem>>, vector<1x8x256xf32>
    %3 = vector.shape_cast %2 : vector<1x8x256xf32> to vector<8x256xf32>
    %4 = tpu.concatenate %1, %3 in 1 : vector<8x256xf32>, vector<8x256xf32> -> vector<8x512xf32>
    %c0_4 = arith.constant 0 : index
    %c0_5 = arith.constant 0 : index
    %5 = vector.load %arg1[%c0_4, %c0_5] : memref<72x512xf32, #tpu.memory_space<vmem>>, vector<72x512xf32>
    %c0_6 = arith.constant 0 : index
    %c0_7 = arith.constant 0 : index
    %6 = vector.load %arg2[%c0_6, %c0_7] : memref<8x72xf32, #tpu.memory_space<vmem>>, vector<8x72xf32>
    %c17_i32 = arith.constant 17 : i32
    %7 = tpu.dynamic_rotate %4 by %c17_i32 dim 1 : vector<8x512xf32>, i32 -> vector<8x512xf32>
    %c16_i32 = arith.constant 16 : i32
    %8 = tpu.dynamic_rotate %4 by %c16_i32 dim 1 : vector<8x512xf32>, i32 -> vector<8x512xf32>
    %c15_i32 = arith.constant 15 : i32
    %9 = tpu.dynamic_rotate %4 by %c15_i32 dim 1 : vector<8x512xf32>, i32 -> vector<8x512xf32>
    %c1_i32 = arith.constant 1 : i32
    %10 = tpu.dynamic_rotate %4 by %c1_i32 dim 1 : vector<8x512xf32>, i32 -> vector<8x512xf32>
    %c511_i32 = arith.constant 511 : i32
    %11 = tpu.dynamic_rotate %4 by %c511_i32 dim 1 : vector<8x512xf32>, i32 -> vector<8x512xf32>
    %c497_i32 = arith.constant 497 : i32
    %12 = tpu.dynamic_rotate %4 by %c497_i32 dim 1 : vector<8x512xf32>, i32 -> vector<8x512xf32>
    %c496_i32 = arith.constant 496 : i32
    %13 = tpu.dynamic_rotate %4 by %c496_i32 dim 1 : vector<8x512xf32>, i32 -> vector<8x512xf32>
    %c495_i32 = arith.constant 495 : i32
    %14 = tpu.dynamic_rotate %4 by %c495_i32 dim 1 : vector<8x512xf32>, i32 -> vector<8x512xf32>
    %15 = tpu.concatenate %7, %8, %9, %10, %4, %11, %12, %13, %14 in 0 : vector<8x512xf32>, vector<8x512xf32>, vector<8x512xf32>, vector<8x512xf32>, vector<8x512xf32>, vector<8x512xf32>, vector<8x512xf32>, vector<8x512xf32>, vector<8x512xf32> -> vector<72x512xf32>
    %16 = arith.mulf %15, %5 : vector<72x512xf32>
    %cst = arith.constant dense<0.000000e+00> : vector<8x512xf32>
    %17 = tpu.matmul %6, %16, %cst {dimension_numbers = #tpu.dot_dimension_numbers<[1], [0], [0], [1], [0, 0, 1, 1], [], []>} : vector<8x72xf32>, vector<72x512xf32>, vector<8x512xf32> -> vector<8x512xf32>
    %c0_8 = arith.constant 0 : index
    %c0_9 = arith.constant 0 : index
    %18 = vector.load %arg3[%c0_8, %c0_9] : memref<8x1xf32, #tpu.memory_space<vmem>>, vector<8x1xf32>
    %c0_10 = arith.constant 0 : index
    %c0_11 = arith.constant 0 : index
    %19 = vector.load %arg4[%c0_10, %c0_11] : memref<8x1xf32, #tpu.memory_space<vmem>>, vector<8x1xf32>
    %cst_12 = arith.constant dense<0.000000e+00> : vector<8xf32>
    %20 = vector.multi_reduction <add>, %17, %cst_12 [1] : vector<8x512xf32> to vector<8xf32>
    %21 = vector.shape_cast %20 : vector<8xf32> to vector<8x1xf32>
    %cst_13 = arith.constant 0.001953125 : f32
    %22 = vector.broadcast %cst_13 : f32 to vector<8x1xf32>
    %23 = arith.mulf %21, %22 : vector<8x1xf32>
    %24 = vector.broadcast %23 : vector<8x1xf32> to vector<8x512xf32>
    %25 = arith.subf %17, %24 : vector<8x512xf32>
    %26 = arith.mulf %25, %25 : vector<8x512xf32>
    %cst_14 = arith.constant dense<0.000000e+00> : vector<8xf32>
    %27 = vector.multi_reduction <add>, %26, %cst_14 [1] : vector<8x512xf32> to vector<8xf32>
    %28 = vector.shape_cast %27 : vector<8xf32> to vector<8x1xf32>
    %cst_15 = arith.constant 0.001953125 : f32
    %29 = vector.broadcast %cst_15 : f32 to vector<8x1xf32>
    %30 = arith.mulf %28, %29 : vector<8x1xf32>
    %cst_16 = arith.constant 9.99999974E-6 : f32
    %31 = vector.broadcast %cst_16 : f32 to vector<8x1xf32>
    %32 = arith.addf %30, %31 : vector<8x1xf32>
    %33 = math.rsqrt %32 : vector<8x1xf32>
    %34 = arith.mulf %18, %33 : vector<8x1xf32>
    %35 = vector.broadcast %34 : vector<8x1xf32> to vector<8x512xf32>
    %36 = arith.mulf %25, %35 : vector<8x512xf32>
    %37 = vector.broadcast %19 : vector<8x1xf32> to vector<8x512xf32>
    %38 = arith.addf %36, %37 : vector<8x512xf32>
    %cst_17 = arith.constant 0.000000e+00 : f32
    %39 = vector.broadcast %cst_17 : f32 to vector<8x512xf32>
    %40 = arith.maximumf %38, %39 : vector<8x512xf32>
    %c0_18 = arith.constant 0 : index
    %c0_19 = arith.constant 0 : index
    %41 = vector.load %arg5[%c0_18, %c0_19] : memref<72x512xf32, #tpu.memory_space<vmem>>, vector<72x512xf32>
    %c0_20 = arith.constant 0 : index
    %c0_21 = arith.constant 0 : index
    %42 = vector.load %arg6[%c0_20, %c0_21] : memref<8x72xf32, #tpu.memory_space<vmem>>, vector<8x72xf32>
    %c17_i32_22 = arith.constant 17 : i32
    %43 = tpu.dynamic_rotate %40 by %c17_i32_22 dim 1 : vector<8x512xf32>, i32 -> vector<8x512xf32>
    %c16_i32_23 = arith.constant 16 : i32
    %44 = tpu.dynamic_rotate %40 by %c16_i32_23 dim 1 : vector<8x512xf32>, i32 -> vector<8x512xf32>
    %c15_i32_24 = arith.constant 15 : i32
    %45 = tpu.dynamic_rotate %40 by %c15_i32_24 dim 1 : vector<8x512xf32>, i32 -> vector<8x512xf32>
    %c1_i32_25 = arith.constant 1 : i32
    %46 = tpu.dynamic_rotate %40 by %c1_i32_25 dim 1 : vector<8x512xf32>, i32 -> vector<8x512xf32>
    %c511_i32_26 = arith.constant 511 : i32
    %47 = tpu.dynamic_rotate %40 by %c511_i32_26 dim 1 : vector<8x512xf32>, i32 -> vector<8x512xf32>
    %c497_i32_27 = arith.constant 497 : i32
    %48 = tpu.dynamic_rotate %40 by %c497_i32_27 dim 1 : vector<8x512xf32>, i32 -> vector<8x512xf32>
    %c496_i32_28 = arith.constant 496 : i32
    %49 = tpu.dynamic_rotate %40 by %c496_i32_28 dim 1 : vector<8x512xf32>, i32 -> vector<8x512xf32>
    %c495_i32_29 = arith.constant 495 : i32
    %50 = tpu.dynamic_rotate %40 by %c495_i32_29 dim 1 : vector<8x512xf32>, i32 -> vector<8x512xf32>
    %51 = tpu.concatenate %43, %44, %45, %46, %40, %47, %48, %49, %50 in 0 : vector<8x512xf32>, vector<8x512xf32>, vector<8x512xf32>, vector<8x512xf32>, vector<8x512xf32>, vector<8x512xf32>, vector<8x512xf32>, vector<8x512xf32>, vector<8x512xf32> -> vector<72x512xf32>
    %52 = arith.mulf %51, %41 : vector<72x512xf32>
    %cst_30 = arith.constant dense<0.000000e+00> : vector<8x512xf32>
    %53 = tpu.matmul %42, %52, %cst_30 {dimension_numbers = #tpu.dot_dimension_numbers<[1], [0], [0], [1], [0, 0, 1, 1], [], []>} : vector<8x72xf32>, vector<72x512xf32>, vector<8x512xf32> -> vector<8x512xf32>
    %c0_31 = arith.constant 0 : index
    %c0_32 = arith.constant 0 : index
    %54 = vector.load %arg7[%c0_31, %c0_32] : memref<8x1xf32, #tpu.memory_space<vmem>>, vector<8x1xf32>
    %c0_33 = arith.constant 0 : index
    %c0_34 = arith.constant 0 : index
    %55 = vector.load %arg8[%c0_33, %c0_34] : memref<8x1xf32, #tpu.memory_space<vmem>>, vector<8x1xf32>
    %cst_35 = arith.constant dense<0.000000e+00> : vector<8xf32>
    %56 = vector.multi_reduction <add>, %53, %cst_35 [1] : vector<8x512xf32> to vector<8xf32>
    %57 = vector.shape_cast %56 : vector<8xf32> to vector<8x1xf32>
    %cst_36 = arith.constant 0.001953125 : f32
    %58 = vector.broadcast %cst_36 : f32 to vector<8x1xf32>
    %59 = arith.mulf %57, %58 : vector<8x1xf32>
    %60 = vector.broadcast %59 : vector<8x1xf32> to vector<8x512xf32>
    %61 = arith.subf %53, %60 : vector<8x512xf32>
    %62 = arith.mulf %61, %61 : vector<8x512xf32>
    %cst_37 = arith.constant dense<0.000000e+00> : vector<8xf32>
    %63 = vector.multi_reduction <add>, %62, %cst_37 [1] : vector<8x512xf32> to vector<8xf32>
    %64 = vector.shape_cast %63 : vector<8xf32> to vector<8x1xf32>
    %cst_38 = arith.constant 0.001953125 : f32
    %65 = vector.broadcast %cst_38 : f32 to vector<8x1xf32>
    %66 = arith.mulf %64, %65 : vector<8x1xf32>
    %cst_39 = arith.constant 9.99999974E-6 : f32
    %67 = vector.broadcast %cst_39 : f32 to vector<8x1xf32>
    %68 = arith.addf %66, %67 : vector<8x1xf32>
    %69 = math.rsqrt %68 : vector<8x1xf32>
    %70 = arith.mulf %54, %69 : vector<8x1xf32>
    %71 = vector.broadcast %70 : vector<8x1xf32> to vector<8x512xf32>
    %72 = arith.mulf %61, %71 : vector<8x512xf32>
    %73 = vector.broadcast %55 : vector<8x1xf32> to vector<8x512xf32>
    %74 = arith.addf %72, %73 : vector<8x512xf32>
    %cst_40 = arith.constant 0.000000e+00 : f32
    %75 = vector.broadcast %cst_40 : f32 to vector<8x512xf32>
    %76 = arith.maximumf %74, %75 : vector<8x512xf32>
    %77 = vector.extract_strided_slice %76 {offsets = [0, 0], sizes = [8, 256], strides = [1, 1]} : vector<8x512xf32> to vector<8x256xf32>
    %c0_41 = arith.constant 0 : index
    %c0_42 = arith.constant 0 : index
    %c0_43 = arith.constant 0 : index
    %78 = vector.load %arg9[%c0_41, %c0_42, %c0_43] : memref<2x8x256xf32, #tpu.memory_space<vmem>>, vector<1x8x256xf32>
    %79 = vector.shape_cast %78 : vector<1x8x256xf32> to vector<8x256xf32>
    %80 = vector.shape_cast %77 : vector<8x256xf32> to vector<1x8x256xf32>
    tpu.vector_store %arg9[%c0_41, %c0_42, %c0_43], %80 {strides = array<i32>} : memref<2x8x256xf32, #tpu.memory_space<vmem>>, vector<1x8x256xf32>,
    %81 = vector.extract_strided_slice %76 {offsets = [0, 256], sizes = [8, 256], strides = [1, 1]} : vector<8x512xf32> to vector<8x256xf32>
    %c1_44 = arith.constant 1 : index
    %c0_45 = arith.constant 0 : index
    %c0_46 = arith.constant 0 : index
    %82 = vector.load %arg9[%c1_44, %c0_45, %c0_46] : memref<2x8x256xf32, #tpu.memory_space<vmem>>, vector<1x8x256xf32>
    %83 = vector.shape_cast %82 : vector<1x8x256xf32> to vector<8x256xf32>
    %84 = vector.shape_cast %81 : vector<8x256xf32> to vector<1x8x256xf32>
    tpu.vector_store %arg9[%c1_44, %c0_45, %c0_46], %84 {strides = array<i32>} : memref<2x8x256xf32, #tpu.memory_space<vmem>>, vector<1x8x256xf32>,
    return
  }
}

</mosaic_0001>

<llo_original>
// kernel: vgg_block.1
$region0: #{vgg_block.1}
  #allocation0 [shape = 'u32[]', space=smem, size = 0x4, offset = 0x4, fixed_abs, tag = 'smem constant byte address 0x4 - core index']
  #allocation1 [shape = 'u32[144,128]{1,0:T(1,128)}', space=vmem, size = 0x12000, scoped, tag = 'internal scratch']
  %s0 = inlined_call_operand.vmem [shape: f32[2,8,256], index: 0, kind: input, shape index: {}]
  %s1 = inlined_call_operand.vmem [shape: f32[72,512], index: 1, kind: input, shape index: {}, may-alias: {1,5}]
  %s2 = inlined_call_operand.vmem [shape: f32[8,72], index: 2, kind: input, shape index: {}]
  %s3 = inlined_call_operand.vmem [shape: f32[8,1], index: 3, kind: input, shape index: {}]
  %s4 = inlined_call_operand.vmem [shape: f32[8,1], index: 4, kind: input, shape index: {}]
  %s5 = inlined_call_operand.vmem [shape: f32[72,512], index: 5, kind: input, shape index: {}, may-alias: {1,5}]
  %s6 = inlined_call_operand.vmem [shape: f32[8,72], index: 6, kind: input, shape index: {}]
  %s7 = inlined_call_operand.vmem [shape: f32[8,1], index: 7, kind: input, shape index: {}]
  %s8 = inlined_call_operand.vmem [shape: f32[8,1], index: 8, kind: input, shape index: {}]
  %s9 = inlined_call_operand.vmem [shape: f32[2,8,256], index: 9, kind: output, shape index: {}]
  %s10 = sld [smem:[#allocation0]]
  $region46: #{vgg_block.1} parent=0
    _
  %s12 = ssub.s32 1, %s10
  %s13 = scalar_select 0, %s12, %s10
  // Predicated region
  $region2: #{vgg_block.1} parent=0 // pred_check
    _
  $region3: #{vgg_block.1} parent=0 // pred_check_branch
    %15 = sbr.rel (0) target = $region5
  $region4: #{vgg_block.1} parent=0 // pred_region
    _
  $region5: #{vgg_block.1} parent=0 // pred_fallthru
    _
  // Predicated region
  $region6: #{vgg_block.1} parent=0 // pred_check
    _
  $region7: #{vgg_block.1} parent=0 // pred_check_branch
    %17 = sbr.rel (0) target = $region9
  $region8: #{vgg_block.1} parent=0 // pred_region
    _
  $region9: #{vgg_block.1} parent=0 // pred_fallthru
    _
  // Predicated region
  $region10: #{vgg_block.1} parent=0 // pred_check
    _
  $region11: #{vgg_block.1} parent=0 // pred_check_branch
    %19 = sbr.rel (0) target = $region13
  $region12: #{vgg_block.1} parent=0 // pred_region
    _
  $region13: #{vgg_block.1} parent=0 // pred_fallthru
    _
  // Predicated region
  $region14: #{vgg_block.1} parent=0 // pred_check
    _
  $region15: #{vgg_block.1} parent=0 // pred_check_branch
    %21 = sbr.rel (0) target = $region17
  $region16: #{vgg_block.1} parent=0 // pred_region
    _
  $region17: #{vgg_block.1} parent=0 // pred_fallthru
    _
  // Predicated region
  $region18: #{vgg_block.1} parent=0 // pred_check
    _
  $region19: #{vgg_block.1} parent=0 // pred_check_branch
    %23 = sbr.rel (0) target = $region21
  $region20: #{vgg_block.1} parent=0 // pred_region
    _
  $region21: #{vgg_block.1} parent=0 // pred_fallthru
    _
  // Predicated region
  $region22: #{vgg_block.1} parent=0 // pred_check
    _
  $region23: #{vgg_block.1} parent=0 // pred_check_branch
    %25 = sbr.rel (0) target = $region25
  $region24: #{vgg_block.1} parent=0 // pred_region
    _
  $region25: #{vgg_block.1} parent=0 // pred_fallthru
    _
  // Predicated region
  $region26: #{vgg_block.1} parent=0 // pred_check
    _
  $region27: #{vgg_block.1} parent=0 // pred_check_branch
    %27 = sbr.rel (0) target = $region29
  $region28: #{vgg_block.1} parent=0 // pred_region
    _
  $region29: #{vgg_block.1} parent=0 // pred_fallthru
    _
  // Predicated region
  $region30: #{vgg_block.1} parent=0 // pred_check
    _
  $region31: #{vgg_block.1} parent=0 // pred_check_branch
    %29 = sbr.rel (0) target = $region33
  $region32: #{vgg_block.1} parent=0 // pred_region
    _
  $region33: #{vgg_block.1} parent=0 // pred_fallthru
    _
  // Predicated region
  $region34: #{vgg_block.1} parent=0 // pred_check
    _
  $region35: #{vgg_block.1} parent=0 // pred_check_branch
    %31 = sbr.rel (0) target = $region37
  $region36: #{vgg_block.1} parent=0 // pred_region
    _
  $region37: #{vgg_block.1} parent=0 // pred_fallthru
    _
  %v32 = vld [vmem:[%s0] sm:$0xff]
  %v33 = vld [vmem:[%s0 + $0x8] sm:$0xff]
  %s34 = scalar_lea.vmem %s0, 16
  %v35 = vld [vmem:[%s34] sm:$0xff]
  %v36 = vld [vmem:[%s34 + $0x8] sm:$0xff]
  %v37 = vld [vmem:[%s1] sm:$0xff]
  %v38 = vld [vmem:[%s1 + $0x8] sm:$0xff]
  %v39 = vld [vmem:[%s1 + $0x10] sm:$0xff]
  %v40 = vld [vmem:[%s1 + $0x18] sm:$0xff]
  %v41 = vld [vmem:[%s1 + $0x20] sm:$0xff]
  %v42 = vld [vmem:[%s1 + $0x28] sm:$0xff]
  %v43 = vld [vmem:[%s1 + $0x30] sm:$0xff]
  %v44 = vld [vmem:[%s1 + $0x38] sm:$0xff]
  %v45 = vld [vmem:[%s1 + $0x40] sm:$0xff]
  %v46 = vld [vmem:[%s1 + $0x48] sm:$0xff]
  %v47 = vld [vmem:[%s1 + $0x50] sm:$0xff]
  %v48 = vld [vmem:[%s1 + $0x58] sm:$0xff]
  %v49 = vld [vmem:[%s1 + $0x60] sm:$0xff]
  %v50 = vld [vmem:[%s1 + $0x68] sm:$0xff]
  %v51 = vld [vmem:[%s1 + $0x70] sm:$0xff]
  %v52 = vld [vmem:[%s1 + $0x78] sm:$0xff]
  %v53 = vld [vmem:[%s1 + $0x80] sm:$0xff]
  %v54 = vld [vmem:[%s1 + $0x88] sm:$0xff]
  %v55 = vld [vmem:[%s1 + $0x90] sm:$0xff]
  %v56 = vld [vmem:[%s1 + $0x98] sm:$0xff]
  %v57 = vld [vmem:[%s1 + $0xa0] sm:$0xff]
  %v58 = vld [vmem:[%s1 + $0xa8] sm:$0xff]
  %v59 = vld [vmem:[%s1 + $0xb0] sm:$0xff]
  %v60 = vld [vmem:[%s1 + $0xb8] sm:$0xff]
  %v61 = vld [vmem:[%s1 + $0xc0] sm:$0xff]
  %v62 = vld [vmem:[%s1 + $0xc8] sm:$0xff]
  %v63 = vld [vmem:[%s1 + $0xd0] sm:$0xff]
  %v64 = vld [vmem:[%s1 + $0xd8] sm:$0xff]
  %v65 = vld [vmem:[%s1 + $0xe0] sm:$0xff]
  %v66 = vld [vmem:[%s1 + $0xe8] sm:$0xff]
  %v67 = vld [vmem:[%s1 + $0xf0] sm:$0xff]
  %v68 = vld [vmem:[%s1 + $0xf8] sm:$0xff]
  %v69 = vld [vmem:[%s1 + $0x100] sm:$0xff]
  %v70 = vld [vmem:[%s1 + $0x108] sm:$0xff]
  %v71 = vld [vmem:[%s1 + $0x110] sm:$0xff]
  %v72 = vld [vmem:[%s1 + $0x118] sm:$0xff]
  %v73 = vld [vmem:[%s2] sm:$0xff]
  %74 = vrot.lane.b32.xlu0 %v32, 17
  %v75 = vpop.permute.xlu0 %74
  %76 = vrot.lane.b32.xlu0 %v33, 17
  %v77 = vpop.permute.xlu0 %76
  %78 = vrot.lane.b32.xlu0 %v35, 17
  %v79 = vpop.permute.xlu0 %78
  %80 = vrot.lane.b32.xlu0 %v36, 17
  %v81 = vpop.permute.xlu0 %80
  %v82 = vlaneseq
  %v83 = vand.u32 %v82, 127
  %vm84 = vcmp.lt.s32.totalorder %v83, 17
  %v85 = vsel %vm84, %v79, %v81
  %v86 = vsel %vm84, %v77, %v79
  %v87 = vsel %vm84, %v75, %v77
  %v88 = vsel %vm84, %v81, %v75
  %89 = vrot.lane.b32.xlu0 %v32, 16
  %v90 = vpop.permute.xlu0 %89
  %91 = vrot.lane.b32.xlu0 %v33, 16
  %v92 = vpop.permute.xlu0 %91
  %93 = vrot.lane.b32.xlu0 %v35, 16
  %v94 = vpop.permute.xlu0 %93
  %95 = vrot.lane.b32.xlu0 %v36, 16
  %v96 = vpop.permute.xlu0 %95
  %vm97 = vcmp.lt.s32.totalorder %v83, 16
  %v98 = vsel %vm97, %v94, %v96
  %v99 = vsel %vm97, %v92, %v94
  %v100 = vsel %vm97, %v90, %v92
  %v101 = vsel %vm97, %v96, %v90
  %102 = vrot.lane.b32.xlu0 %v32, 15
  %v103 = vpop.permute.xlu0 %102
  %104 = vrot.lane.b32.xlu0 %v33, 15
  %v105 = vpop.permute.xlu0 %104
  %106 = vrot.lane.b32.xlu0 %v35, 15
  %v107 = vpop.permute.xlu0 %106
  %108 = vrot.lane.b32.xlu0 %v36, 15
  %v109 = vpop.permute.xlu0 %108
  %vm110 = vcmp.lt.s32.totalorder %v83, 15
  %v111 = vsel %vm110, %v107, %v109
  %v112 = vsel %vm110, %v105, %v107
  %v113 = vsel %vm110, %v103, %v105
  %v114 = vsel %vm110, %v109, %v103
  %115 = vrot.lane.b32.xlu0 %v32, 1
  %v116 = vpop.permute.xlu0 %115
  %117 = vrot.lane.b32.xlu0 %v33, 1
  %v118 = vpop.permute.xlu0 %117
  %119 = vrot.lane.b32.xlu0 %v35, 1
  %v120 = vpop.permute.xlu0 %119
  %121 = vrot.lane.b32.xlu0 %v36, 1
  %v122 = vpop.permute.xlu0 %121
  %vm123 = vcmp.lt.s32.totalorder %v83, 1
  %v124 = vsel %vm123, %v120, %v122
  %v125 = vsel %vm123, %v118, %v120
  %v126 = vsel %vm123, %v116, %v118
  %v127 = vsel %vm123, %v122, %v116
  %128 = vrot.lane.b32.xlu0 %v32, 127
  %v129 = vpop.permute.xlu0 %128
  %130 = vrot.lane.b32.xlu0 %v33, 127
  %v131 = vpop.permute.xlu0 %130
  %132 = vrot.lane.b32.xlu0 %v35, 127
  %v133 = vpop.permute.xlu0 %132
  %134 = vrot.lane.b32.xlu0 %v36, 127
  %v135 = vpop.permute.xlu0 %134
  %vm136 = vcmp.lt.s32.totalorder %v83, 127
  %v137 = vsel %vm136, %v133, %v135
  %v138 = vsel %vm136, %v131, %v133
  %v139 = vsel %vm136, %v129, %v131
  %v140 = vsel %vm136, %v135, %v129
  %141 = vrot.lane.b32.xlu0 %v32, 113
  %v142 = vpop.permute.xlu0 %141
  %143 = vrot.lane.b32.xlu0 %v33, 113
  %v144 = vpop.permute.xlu0 %143
  %145 = vrot.lane.b32.xlu0 %v35, 113
  %v146 = vpop.permute.xlu0 %145
  %147 = vrot.lane.b32.xlu0 %v36, 113
  %v148 = vpop.permute.xlu0 %147
  %vm149 = vcmp.lt.s32.totalorder %v83, 113
  %v150 = vsel %vm149, %v146, %v148
  %v151 = vsel %vm149, %v144, %v146
  %v152 = vsel %vm149, %v142, %v144
  %v153 = vsel %vm149, %v148, %v142
  %154 = vrot.lane.b32.xlu0 %v32, 112
  %v155 = vpop.permute.xlu0 %154
  %156 = vrot.lane.b32.xlu0 %v33, 112
  %v157 = vpop.permute.xlu0 %156
  %158 = vrot.lane.b32.xlu0 %v35, 112
  %v159 = vpop.permute.xlu0 %158
  %160 = vrot.lane.b32.xlu0 %v36, 112
  %v161 = vpop.permute.xlu0 %160
  %vm162 = vcmp.lt.s32.totalorder %v83, 112
  %v163 = vsel %vm162, %v159, %v161
  %v164 = vsel %vm162, %v157, %v159
  %v165 = vsel %vm162, %v155, %v157
  %v166 = vsel %vm162, %v161, %v155
  %167 = vrot.lane.b32.xlu0 %v32, 111
  %v168 = vpop.permute.xlu0 %167
  %169 = vrot.lane.b32.xlu0 %v33, 111
  %v170 = vpop.permute.xlu0 %169
  %171 = vrot.lane.b32.xlu0 %v35, 111
  %v172 = vpop.permute.xlu0 %171
  %173 = vrot.lane.b32.xlu0 %v36, 111
  %v174 = vpop.permute.xlu0 %173
  %vm175 = vcmp.lt.s32.totalorder %v83, 111
  %v176 = vsel %vm175, %v172, %v174
  %v177 = vsel %vm175, %v170, %v172
  %v178 = vsel %vm175, %v168, %v170
  %v179 = vsel %vm175, %v174, %v168
  %v180 = vmul.f32 %v88, %v37
  %v181 = vmul.f32 %v87, %v38
  %v182 = vmul.f32 %v86, %v39
  %v183 = vmul.f32 %v85, %v40
  %v184 = vmul.f32 %v101, %v41
  %v185 = vmul.f32 %v100, %v42
  %v186 = vmul.f32 %v99, %v43
  %v187 = vmul.f32 %v98, %v44
  %v188 = vmul.f32 %v114, %v45
  %v189 = vmul.f32 %v113, %v46
  %v190 = vmul.f32 %v112, %v47
  %v191 = vmul.f32 %v111, %v48
  %v192 = vmul.f32 %v127, %v49
  %v193 = vmul.f32 %v126, %v50
  %v194 = vmul.f32 %v125, %v51
  %v195 = vmul.f32 %v124, %v52
  %v196 = vmul.f32 %v32, %v53
  %v197 = vmul.f32 %v33, %v54
  %v198 = vmul.f32 %v35, %v55
  %v199 = vmul.f32 %v36, %v56
  %v200 = vmul.f32 %v139, %v57
  %v201 = vmul.f32 %v138, %v58
  %v202 = vmul.f32 %v137, %v59
  %v203 = vmul.f32 %v140, %v60
  %v204 = vmul.f32 %v152, %v61
  %v205 = vmul.f32 %v151, %v62
  %v206 = vmul.f32 %v150, %v63
  %v207 = vmul.f32 %v153, %v64
  %v208 = vmul.f32 %v165, %v65
  %v209 = vmul.f32 %v164, %v66
  %v210 = vmul.f32 %v163, %v67
  %v211 = vmul.f32 %v166, %v68
  %v212 = vmul.f32 %v178, %v69
  %v213 = vmul.f32 %v177, %v70
  %v214 = vmul.f32 %v176, %v71
  %v215 = vmul.f32 %v179, %v72
  %vm216 = vcmask 588800
  %v218 = vsel %vm216, %v73, 0
  %220 = vmatprep.subr.mxu0 0.0
  %221 = vmatpush1.msra.mxu0 0.0
  %222 = vmatprep.subr.mxu0 0.0
  %223 = vmatpush1.msra.mxu0 0.0
  %224 = vmatprep.subr.mxu0 0.0
  %225 = vmatpush1.msra.mxu0 0.0
  %226 = vmatprep.subr.mxu0 0.0
  %227 = vmatpush1.msra.mxu0 0.0
  %228 = vmatprep.subr.mxu0 0.0
  %229 = vmatpush1.msra.mxu0 0.0
  %230 = vmatprep.subr.mxu0 0.0
  %231 = vmatpush1.msra.mxu0 0.0
  %232 = vmatprep.subr.mxu0 0.0
  %233 = vmatpush1.msra.mxu0 0.0
  %234 = vmatprep.subr.mxu0 %v213
  %235 = vmatpush1.msra.mxu0 %v212
  %236 = vmatprep.subr.mxu0 %v209
  %237 = vmatpush1.msra.mxu0 %v208
  %238 = vmatprep.subr.mxu0 %v205
  %239 = vmatpush1.msra.mxu0 %v204
  %240 = vmatprep.subr.mxu0 %v201
  %241 = vmatpush1.msra.mxu0 %v200
  %242 = vmatprep.subr.mxu0 %v197
  %243 = vmatpush1.msra.mxu0 %v196
  %244 = vmatprep.subr.mxu0 %v193
  %245 = vmatpush1.msra.mxu0 %v192
  %246 = vmatprep.subr.mxu0 %v189
  %247 = vmatpush1.msra.mxu0 %v188
  %248 = vmatprep.subr.mxu0 %v185
  %249 = vmatpush1.msra.mxu0 %v184
  %250 = vmatprep.subr.mxu0 %v181
  %251 = vmatpush1.msra.mxu0 %v180
  %252 = vmatprep.subr.mxu0 0.0
  %253 = vmatpush2.msra.mxu0 0.0
  %254 = vmatprep.subr.mxu0 0.0
  %255 = vmatpush2.msra.mxu0 0.0
  %256 = vmatprep.subr.mxu0 0.0
  %257 = vmatpush2.msra.mxu0 0.0
  %258 = vmatprep.subr.mxu0 0.0
  %259 = vmatpush2.msra.mxu0 0.0
  %260 = vmatprep.subr.mxu0 0.0
  %261 = vmatpush2.msra.mxu0 0.0
  %262 = vmatprep.subr.mxu0 0.0
  %263 = vmatpush2.msra.mxu0 0.0
  %264 = vmatprep.subr.mxu0 0.0
  %265 = vmatpush2.msra.mxu0 0.0
  %266 = vmatprep.subr.mxu0 0.0
  %267 = vmatpush2.msra.mxu0 0.0
  %268 = vmatprep.subr.mxu0 0.0
  %269 = vmatpush2.msra.mxu0 0.0
  %270 = vmatprep.subr.mxu0 0.0
  %271 = vmatpush2.msra.mxu0 0.0
  %272 = vmatprep.subr.mxu0 0.0
  %273 = vmatpush2.msra.mxu0 0.0
  %274 = vmatprep.subr.mxu0 0.0
  %275 = vmatpush2.msra.mxu0 0.0
  %276 = vmatprep.subr.mxu0 0.0
  %277 = vmatpush2.msra.mxu0 0.0
  %278 = vmatprep.subr.mxu0 0.0
  %279 = vmatpush2.msra.mxu0 0.0
  %280 = vmatprep.subr.mxu0 0.0
  %281 = vmatpush2.msra.mxu0 0.0
  %282 = vmatprep.subr.mxu0 0.0
  %283 = vmatpush2.msra.mxu0 0.0
  %284 = vmatprep.mubr.f32.mxu0 0.0
  %285 = vmatmul.mubr.f32.gmra.mxu0 %v218
  %v286 = vpop.f32.mrf.mxu0
  %v287 = vadd.f32 0.0, %v286
  %v288 = vpop.f32.mrf.mxu0
  %v289 = vadd.f32 0.0, %v288
  %290 = vdwg.mxu0
  %291 = vmatprep.subr.mxu0 0.0
  %292 = vmatpush1.msra.mxu0 0.0
  %293 = vmatprep.subr.mxu0 0.0
  %294 = vmatpush1.msra.mxu0 0.0
  %295 = vmatprep.subr.mxu0 0.0
  %296 = vmatpush1.msra.mxu0 0.0
  %297 = vmatprep.subr.mxu0 0.0
  %298 = vmatpush1.msra.mxu0 0.0
  %299 = vmatprep.subr.mxu0 0.0
  %300 = vmatpush1.msra.mxu0 0.0
  %301 = vmatprep.subr.mxu0 0.0
  %302 = vmatpush1.msra.mxu0 0.0
  %303 = vmatprep.subr.mxu0 0.0
  %304 = vmatpush1.msra.mxu0 0.0
  %305 = vmatprep.subr.mxu0 %v215
  %306 = vmatpush1.msra.mxu0 %v214
  %307 = vmatprep.subr.mxu0 %v211
  %308 = vmatpush1.msra.mxu0 %v210
  %309 = vmatprep.subr.mxu0 %v207
  %310 = vmatpush1.msra.mxu0 %v206
  %311 = vmatprep.subr.mxu0 %v203
  %312 = vmatpush1.msra.mxu0 %v202
  %313 = vmatprep.subr.mxu0 %v199
  %314 = vmatpush1.msra.mxu0 %v198
  %315 = vmatprep.subr.mxu0 %v195
  %316 = vmatpush1.msra.mxu0 %v194
  %317 = vmatprep.subr.mxu0 %v191
  %318 = vmatpush1.msra.mxu0 %v190
  %319 = vmatprep.subr.mxu0 %v187
  %320 = vmatpush1.msra.mxu0 %v186
  %321 = vmatprep.subr.mxu0 %v183
  %322 = vmatpush1.msra.mxu0 %v182
  %323 = vmatprep.subr.mxu0 0.0
  %324 = vmatpush2.msra.mxu0 0.0
  %325 = vmatprep.subr.mxu0 0.0
  %326 = vmatpush2.msra.mxu0 0.0
  %327 = vmatprep.subr.mxu0 0.0
  %328 = vmatpush2.msra.mxu0 0.0
  %329 = vmatprep.subr.mxu0 0.0
  %330 = vmatpush2.msra.mxu0 0.0
  %331 = vmatprep.subr.mxu0 0.0
  %332 = vmatpush2.msra.mxu0 0.0
  %333 = vmatprep.subr.mxu0 0.0
  %334 = vmatpush2.msra.mxu0 0.0
  %335 = vmatprep.subr.mxu0 0.0
  %336 = vmatpush2.msra.mxu0 0.0
  %337 = vmatprep.subr.mxu0 0.0
  %338 = vmatpush2.msra.mxu0 0.0
  %339 = vmatprep.subr.mxu0 0.0
  %340 = vmatpush2.msra.mxu0 0.0
  %341 = vmatprep.subr.mxu0 0.0
  %342 = vmatpush2.msra.mxu0 0.0
  %343 = vmatprep.subr.mxu0 0.0
  %344 = vmatpush2.msra.mxu0 0.0
  %345 = vmatprep.subr.mxu0 0.0
  %346 = vmatpush2.msra.mxu0 0.0
  %347 = vmatprep.subr.mxu0 0.0
  %348 = vmatpush2.msra.mxu0 0.0
  %349 = vmatprep.subr.mxu0 0.0
  %350 = vmatpush2.msra.mxu0 0.0
  %351 = vmatprep.subr.mxu0 0.0
  %352 = vmatpush2.msra.mxu0 0.0
  %353 = vmatprep.subr.mxu0 0.0
  %354 = vmatpush2.msra.mxu0 0.0
  %355 = vmatprep.mubr.f32.mxu0 0.0
  %356 = vmatmul.mubr.f32.gmra.mxu0 %v218
  %v357 = vpop.f32.mrf.mxu0
  %v358 = vadd.f32 0.0, %v357
  %v359 = vpop.f32.mrf.mxu0
  %v360 = vadd.f32 0.0, %v359
  %361 = vdwg.mxu0
  %v362 = vld [vmem:[%s3] sm:$0xff]
  %v363 = vld [vmem:[%s4] sm:$0xff]
  %v364 = vadd.f32 %v287, %v289
  %v365 = vadd.f32 %v364, %v358
  %v366 = vadd.f32 %v365, %v360
  %367 = vadd.xlane.f32.xlu0 %v366
  %v368 = vpop.xlane.xlu0 %367
  %v369 = vmul.f32 %v368, 0.001953125
  %v370 = vsub.f32 %v287, %v369
  %v371 = vsub.f32 %v289, %v369
  %v372 = vsub.f32 %v358, %v369
  %v373 = vsub.f32 %v360, %v369
  %v374 = vmul.f32 %v370, %v370
  %v375 = vmul.f32 %v371, %v371
  %v376 = vmul.f32 %v372, %v372
  %v377 = vmul.f32 %v373, %v373
  %v378 = vadd.f32 %v374, %v375
  %v379 = vadd.f32 %v378, %v376
  %v380 = vadd.f32 %v379, %v377
  %381 = vadd.xlane.f32.xlu0 %v380
  %v382 = vpop.xlane.xlu0 %381
  %v383 = vmul.f32 %v382, 0.001953125
  %v384 = vadd.f32 %v383, 1e-05
  %v385 = vrsqrt.pop %v384
  %v386 = vmul.f32 %v362, %v385
  %388 = vset.pattern.permute.xlu0 0
  %389 = vperm.xlu0 %388, %v386
  %v390 = vpop.permute.xlu0 %389
  %v392 = vmul.f32 %v370, %v390
  %v393 = vmul.f32 %v371, %v390
  %v394 = vmul.f32 %v372, %v390
  %v395 = vmul.f32 %v373, %v390
  %397 = vset.pattern.permute.xlu0 0
  %398 = vperm.xlu0 %397, %v363
  %v399 = vpop.permute.xlu0 %398
  %v401 = vadd.f32 %v392, %v399
  %v402 = vadd.f32 %v393, %v399
  %v403 = vadd.f32 %v394, %v399
  %v404 = vadd.f32 %v395, %v399
  %v405 = vmax.f32 %v401, 0.0
  %v406 = vmax.f32 %v402, 0.0
  %v407 = vmax.f32 %v403, 0.0
  %v408 = vmax.f32 %v404, 0.0
  %v409 = vld [vmem:[%s5] sm:$0xff]
  %v410 = vld [vmem:[%s5 + $0x8] sm:$0xff]
  %v411 = vld [vmem:[%s5 + $0x10] sm:$0xff]
  %v412 = vld [vmem:[%s5 + $0x18] sm:$0xff]
  %v413 = vld [vmem:[%s5 + $0x20] sm:$0xff]
  %v414 = vld [vmem:[%s5 + $0x28] sm:$0xff]
  %v415 = vld [vmem:[%s5 + $0x30] sm:$0xff]
  %v416 = vld [vmem:[%s5 + $0x38] sm:$0xff]
  %v417 = vld [vmem:[%s5 + $0x40] sm:$0xff]
  %v418 = vld [vmem:[%s5 + $0x48] sm:$0xff]
  %v419 = vld [vmem:[%s5 + $0x50] sm:$0xff]
  %v420 = vld [vmem:[%s5 + $0x58] sm:$0xff]
  %v421 = vld [vmem:[%s5 + $0x60] sm:$0xff]
  %v422 = vld [vmem:[%s5 + $0x68] sm:$0xff]
  %v423 = vld [vmem:[%s5 + $0x70] sm:$0xff]
  %v424 = vld [vmem:[%s5 + $0x78] sm:$0xff]
  %v425 = vld [vmem:[%s5 + $0x80] sm:$0xff]
  %v426 = vld [vmem:[%s5 + $0x88] sm:$0xff]
  %v427 = vld [vmem:[%s5 + $0x90] sm:$0xff]
  %v428 = vld [vmem:[%s5 + $0x98] sm:$0xff]
  %v429 = vld [vmem:[%s5 + $0xa0] sm:$0xff]
  %v430 = vld [vmem:[%s5 + $0xa8] sm:$0xff]
  %v431 = vld [vmem:[%s5 + $0xb0] sm:$0xff]
  %v432 = vld [vmem:[%s5 + $0xb8] sm:$0xff]
  %v433 = vld [vmem:[%s5 + $0xc0] sm:$0xff]
  %v434 = vld [vmem:[%s5 + $0xc8] sm:$0xff]
  %v435 = vld [vmem:[%s5 + $0xd0] sm:$0xff]
  %v436 = vld [vmem:[%s5 + $0xd8] sm:$0xff]
  %v437 = vld [vmem:[%s5 + $0xe0] sm:$0xff]
  %v438 = vld [vmem:[%s5 + $0xe8] sm:$0xff]
  %v439 = vld [vmem:[%s5 + $0xf0] sm:$0xff]
  %v440 = vld [vmem:[%s5 + $0xf8] sm:$0xff]
  %v441 = vld [vmem:[%s5 + $0x100] sm:$0xff]
  %v442 = vld [vmem:[%s5 + $0x108] sm:$0xff]
  %v443 = vld [vmem:[%s5 + $0x110] sm:$0xff]
  %v444 = vld [vmem:[%s5 + $0x118] sm:$0xff]
  %v445 = vld [vmem:[%s6] sm:$0xff]
  %446 = vrot.lane.b32.xlu0 %v405, 17
  %v447 = vpop.permute.xlu0 %446
  %448 = vrot.lane.b32.xlu0 %v406, 17
  %v449 = vpop.permute.xlu0 %448
  %450 = vrot.lane.b32.xlu0 %v407, 17
  %v451 = vpop.permute.xlu0 %450
  %452 = vrot.lane.b32.xlu0 %v408, 17
  %v453 = vpop.permute.xlu0 %452
  %v454 = vsel %vm84, %v451, %v453
  %v455 = vsel %vm84, %v449, %v451
  %v456 = vsel %vm84, %v447, %v449
  %v457 = vsel %vm84, %v453, %v447
  %458 = vrot.lane.b32.xlu0 %v405, 16
  %v459 = vpop.permute.xlu0 %458
  %460 = vrot.lane.b32.xlu0 %v406, 16
  %v461 = vpop.permute.xlu0 %460
  %462 = vrot.lane.b32.xlu0 %v407, 16
  %v463 = vpop.permute.xlu0 %462
  %464 = vrot.lane.b32.xlu0 %v408, 16
  %v465 = vpop.permute.xlu0 %464
  %v466 = vsel %vm97, %v463, %v465
  %v467 = vsel %vm97, %v461, %v463
  %v468 = vsel %vm97, %v459, %v461
  %v469 = vsel %vm97, %v465, %v459
  %470 = vrot.lane.b32.xlu0 %v405, 15
  %v471 = vpop.permute.xlu0 %470
  %472 = vrot.lane.b32.xlu0 %v406, 15
  %v473 = vpop.permute.xlu0 %472
  %474 = vrot.lane.b32.xlu0 %v407, 15
  %v475 = vpop.permute.xlu0 %474
  %476 = vrot.lane.b32.xlu0 %v408, 15
  %v477 = vpop.permute.xlu0 %476
  %v478 = vsel %vm110, %v475, %v477
  %v479 = vsel %vm110, %v473, %v475
  %v480 = vsel %vm110, %v471, %v473
  %v481 = vsel %vm110, %v477, %v471
  %482 = vrot.lane.b32.xlu0 %v405, 1
  %v483 = vpop.permute.xlu0 %482
  %484 = vrot.lane.b32.xlu0 %v406, 1
  %v485 = vpop.permute.xlu0 %484
  %486 = vrot.lane.b32.xlu0 %v407, 1
  %v487 = vpop.permute.xlu0 %486
  %488 = vrot.lane.b32.xlu0 %v408, 1
  %v489 = vpop.permute.xlu0 %488
  %v490 = vsel %vm123, %v487, %v489
  %v491 = vsel %vm123, %v485, %v487
  %v492 = vsel %vm123, %v483, %v485
  %v493 = vsel %vm123, %v489, %v483
  %494 = vrot.lane.b32.xlu0 %v405, 127
  %v495 = vpop.permute.xlu0 %494
  %496 = vrot.lane.b32.xlu0 %v406, 127
  %v497 = vpop.permute.xlu0 %496
  %498 = vrot.lane.b32.xlu0 %v407, 127
  %v499 = vpop.permute.xlu0 %498
  %500 = vrot.lane.b32.xlu0 %v408, 127
  %v501 = vpop.permute.xlu0 %500
  %v502 = vsel %vm136, %v499, %v501
  %v503 = vsel %vm136, %v497, %v499
  %v504 = vsel %vm136, %v495, %v497
  %v505 = vsel %vm136, %v501, %v495
  %506 = vrot.lane.b32.xlu0 %v405, 113
  %v507 = vpop.permute.xlu0 %506
  %508 = vrot.lane.b32.xlu0 %v406, 113
  %v509 = vpop.permute.xlu0 %508
  %510 = vrot.lane.b32.xlu0 %v407, 113
  %v511 = vpop.permute.xlu0 %510
  %512 = vrot.lane.b32.xlu0 %v408, 113
  %v513 = vpop.permute.xlu0 %512
  %v514 = vsel %vm149, %v511, %v513
  %v515 = vsel %vm149, %v509, %v511
  %v516 = vsel %vm149, %v507, %v509
  %v517 = vsel %vm149, %v513, %v507
  %518 = vrot.lane.b32.xlu0 %v405, 112
  %v519 = vpop.permute.xlu0 %518
  %520 = vrot.lane.b32.xlu0 %v406, 112
  %v521 = vpop.permute.xlu0 %520
  %522 = vrot.lane.b32.xlu0 %v407, 112
  %v523 = vpop.permute.xlu0 %522
  %524 = vrot.lane.b32.xlu0 %v408, 112
  %v525 = vpop.permute.xlu0 %524
  %v526 = vsel %vm162, %v523, %v525
  %v527 = vsel %vm162, %v521, %v523
  %v528 = vsel %vm162, %v519, %v521
  %v529 = vsel %vm162, %v525, %v519
  %530 = vrot.lane.b32.xlu0 %v405, 111
  %v531 = vpop.permute.xlu0 %530
  %532 = vrot.lane.b32.xlu0 %v406, 111
  %v533 = vpop.permute.xlu0 %532
  %534 = vrot.lane.b32.xlu0 %v407, 111
  %v535 = vpop.permute.xlu0 %534
  %536 = vrot.lane.b32.xlu0 %v408, 111
  %v537 = vpop.permute.xlu0 %536
  %v538 = vsel %vm175, %v535, %v537
  %v539 = vsel %vm175, %v533, %v535
  %v540 = vsel %vm175, %v531, %v533
  %v541 = vsel %vm175, %v537, %v531
  %v542 = vmul.f32 %v457, %v409
  %v543 = vmul.f32 %v456, %v410
  %v544 = vmul.f32 %v455, %v411
  %v545 = vmul.f32 %v454, %v412
  %v546 = vmul.f32 %v469, %v413
  %v547 = vmul.f32 %v468, %v414
  %v548 = vmul.f32 %v467, %v415
  %v549 = vmul.f32 %v466, %v416
  %v550 = vmul.f32 %v481, %v417
  %v551 = vmul.f32 %v480, %v418
  %v552 = vmul.f32 %v479, %v419
  %v553 = vmul.f32 %v478, %v420
  %v554 = vmul.f32 %v493, %v421
  %v555 = vmul.f32 %v492, %v422
  %v556 = vmul.f32 %v491, %v423
  %v557 = vmul.f32 %v490, %v424
  %v558 = vmul.f32 %v405, %v425
  %v559 = vmul.f32 %v406, %v426
  %v560 = vmul.f32 %v407, %v427
  %v561 = vmul.f32 %v408, %v428
  %v562 = vmul.f32 %v504, %v429
  %v563 = vmul.f32 %v503, %v430
  %v564 = vmul.f32 %v502, %v431
  %v565 = vmul.f32 %v505, %v432
  %v566 = vmul.f32 %v516, %v433
  %v567 = vmul.f32 %v515, %v434
  %v568 = vmul.f32 %v514, %v435
  %v569 = vmul.f32 %v517, %v436
  %v570 = vmul.f32 %v528, %v437
  %v571 = vmul.f32 %v527, %v438
  %v572 = vmul.f32 %v526, %v439
  %v573 = vmul.f32 %v529, %v440
  %v574 = vmul.f32 %v540, %v441
  %v575 = vmul.f32 %v539, %v442
  %v576 = vmul.f32 %v538, %v443
  %v577 = vmul.f32 %v541, %v444
  %v579 = vsel %vm216, %v445, 0
  %581 = vmatprep.subr.mxu0 0.0
  %582 = vmatpush1.msra.mxu0 0.0
  %583 = vmatprep.subr.mxu0 0.0
  %584 = vmatpush1.msra.mxu0 0.0
  %585 = vmatprep.subr.mxu0 0.0
  %586 = vmatpush1.msra.mxu0 0.0
  %587 = vmatprep.subr.mxu0 0.0
  %588 = vmatpush1.msra.mxu0 0.0
  %589 = vmatprep.subr.mxu0 0.0
  %590 = vmatpush1.msra.mxu0 0.0
  %591 = vmatprep.subr.mxu0 0.0
  %592 = vmatpush1.msra.mxu0 0.0
  %593 = vmatprep.subr.mxu0 0.0
  %594 = vmatpush1.msra.mxu0 0.0
  %595 = vmatprep.subr.mxu0 %v575
  %596 = vmatpush1.msra.mxu0 %v574
  %597 = vmatprep.subr.mxu0 %v571
  %598 = vmatpush1.msra.mxu0 %v570
  %599 = vmatprep.subr.mxu0 %v567
  %600 = vmatpush1.msra.mxu0 %v566
  %601 = vmatprep.subr.mxu0 %v563
  %602 = vmatpush1.msra.mxu0 %v562
  %603 = vmatprep.subr.mxu0 %v559
  %604 = vmatpush1.msra.mxu0 %v558
  %605 = vmatprep.subr.mxu0 %v555
  %606 = vmatpush1.msra.mxu0 %v554
  %607 = vmatprep.subr.mxu0 %v551
  %608 = vmatpush1.msra.mxu0 %v550
  %609 = vmatprep.subr.mxu0 %v547
  %610 = vmatpush1.msra.mxu0 %v546
  %611 = vmatprep.subr.mxu0 %v543
  %612 = vmatpush1.msra.mxu0 %v542
  %613 = vmatprep.subr.mxu0 0.0
  %614 = vmatpush2.msra.mxu0 0.0
  %615 = vmatprep.subr.mxu0 0.0
  %616 = vmatpush2.msra.mxu0 0.0
  %617 = vmatprep.subr.mxu0 0.0
  %618 = vmatpush2.msra.mxu0 0.0
  %619 = vmatprep.subr.mxu0 0.0
  %620 = vmatpush2.msra.mxu0 0.0
  %621 = vmatprep.subr.mxu0 0.0
  %622 = vmatpush2.msra.mxu0 0.0
  %623 = vmatprep.subr.mxu0 0.0
  %624 = vmatpush2.msra.mxu0 0.0
  %625 = vmatprep.subr.mxu0 0.0
  %626 = vmatpush2.msra.mxu0 0.0
  %627 = vmatprep.subr.mxu0 0.0
  %628 = vmatpush2.msra.mxu0 0.0
  %629 = vmatprep.subr.mxu0 0.0
  %630 = vmatpush2.msra.mxu0 0.0
  %631 = vmatprep.subr.mxu0 0.0
  %632 = vmatpush2.msra.mxu0 0.0
  %633 = vmatprep.subr.mxu0 0.0
  %634 = vmatpush2.msra.mxu0 0.0
  %635 = vmatprep.subr.mxu0 0.0
  %636 = vmatpush2.msra.mxu0 0.0
  %637 = vmatprep.subr.mxu0 0.0
  %638 = vmatpush2.msra.mxu0 0.0
  %639 = vmatprep.subr.mxu0 0.0
  %640 = vmatpush2.msra.mxu0 0.0
  %641 = vmatprep.subr.mxu0 0.0
  %642 = vmatpush2.msra.mxu0 0.0
  %643 = vmatprep.subr.mxu0 0.0
  %644 = vmatpush2.msra.mxu0 0.0
  %645 = vmatprep.mubr.f32.mxu0 0.0
  %646 = vmatmul.mubr.f32.gmra.mxu0 %v579
  %v647 = vpop.f32.mrf.mxu0
  %v648 = vadd.f32 0.0, %v647
  %v649 = vpop.f32.mrf.mxu0
  %v650 = vadd.f32 0.0, %v649
  %651 = vdwg.mxu0
  %652 = vmatprep.subr.mxu0 0.0
  %653 = vmatpush1.msra.mxu0 0.0
  %654 = vmatprep.subr.mxu0 0.0
  %655 = vmatpush1.msra.mxu0 0.0
  %656 = vmatprep.subr.mxu0 0.0
  %657 = vmatpush1.msra.mxu0 0.0
  %658 = vmatprep.subr.mxu0 0.0
  %659 = vmatpush1.msra.mxu0 0.0
  %660 = vmatprep.subr.mxu0 0.0
  %661 = vmatpush1.msra.mxu0 0.0
  %662 = vmatprep.subr.mxu0 0.0
  %663 = vmatpush1.msra.mxu0 0.0
  %664 = vmatprep.subr.mxu0 0.0
  %665 = vmatpush1.msra.mxu0 0.0
  %666 = vmatprep.subr.mxu0 %v577
  %667 = vmatpush1.msra.mxu0 %v576
  %668 = vmatprep.subr.mxu0 %v573
  %669 = vmatpush1.msra.mxu0 %v572
  %670 = vmatprep.subr.mxu0 %v569
  %671 = vmatpush1.msra.mxu0 %v568
  %672 = vmatprep.subr.mxu0 %v565
  %673 = vmatpush1.msra.mxu0 %v564
  %674 = vmatprep.subr.mxu0 %v561
  %675 = vmatpush1.msra.mxu0 %v560
  %676 = vmatprep.subr.mxu0 %v557
  %677 = vmatpush1.msra.mxu0 %v556
  %678 = vmatprep.subr.mxu0 %v553
  %679 = vmatpush1.msra.mxu0 %v552
  %680 = vmatprep.subr.mxu0 %v549
  %681 = vmatpush1.msra.mxu0 %v548
  %682 = vmatprep.subr.mxu0 %v545
  %683 = vmatpush1.msra.mxu0 %v544
  %684 = vmatprep.subr.mxu0 0.0
  %685 = vmatpush2.msra.mxu0 0.0
  %686 = vmatprep.subr.mxu0 0.0
  %687 = vmatpush2.msra.mxu0 0.0
  %688 = vmatprep.subr.mxu0 0.0
  %689 = vmatpush2.msra.mxu0 0.0
  %690 = vmatprep.subr.mxu0 0.0
  %691 = vmatpush2.msra.mxu0 0.0
  %692 = vmatprep.subr.mxu0 0.0
  %693 = vmatpush2.msra.mxu0 0.0
  %694 = vmatprep.subr.mxu0 0.0
  %695 = vmatpush2.msra.mxu0 0.0
  %696 = vmatprep.subr.mxu0 0.0
  %697 = vmatpush2.msra.mxu0 0.0
  %698 = vmatprep.subr.mxu0 0.0
  %699 = vmatpush2.msra.mxu0 0.0
  %700 = vmatprep.subr.mxu0 0.0
  %701 = vmatpush2.msra.mxu0 0.0
  %702 = vmatprep.subr.mxu0 0.0
  %703 = vmatpush2.msra.mxu0 0.0
  %704 = vmatprep.subr.mxu0 0.0
  %705 = vmatpush2.msra.mxu0 0.0
  %706 = vmatprep.subr.mxu0 0.0
  %707 = vmatpush2.msra.mxu0 0.0
  %708 = vmatprep.subr.mxu0 0.0
  %709 = vmatpush2.msra.mxu0 0.0
  %710 = vmatprep.subr.mxu0 0.0
  %711 = vmatpush2.msra.mxu0 0.0
  %712 = vmatprep.subr.mxu0 0.0
  %713 = vmatpush2.msra.mxu0 0.0
  %714 = vmatprep.subr.mxu0 0.0
  %715 = vmatpush2.msra.mxu0 0.0
  %716 = vmatprep.mubr.f32.mxu0 0.0
  %717 = vmatmul.mubr.f32.gmra.mxu0 %v579
  %v718 = vpop.f32.mrf.mxu0
  %v719 = vadd.f32 0.0, %v718
  %v720 = vpop.f32.mrf.mxu0
  %v721 = vadd.f32 0.0, %v720
  %722 = vdwg.mxu0
  %v723 = vld [vmem:[%s7] sm:$0xff]
  %v724 = vld [vmem:[%s8] sm:$0xff]
  %v725 = vadd.f32 %v648, %v650
  %v726 = vadd.f32 %v725, %v719
  %v727 = vadd.f32 %v726, %v721
  %728 = vadd.xlane.f32.xlu0 %v727
  %v729 = vpop.xlane.xlu0 %728
  %v730 = vmul.f32 %v729, 0.001953125
  %v731 = vsub.f32 %v648, %v730
  %v732 = vsub.f32 %v650, %v730
  %v733 = vsub.f32 %v719, %v730
  %v734 = vsub.f32 %v721, %v730
  %v735 = vmul.f32 %v731, %v731
  %v736 = vmul.f32 %v732, %v732
  %v737 = vmul.f32 %v733, %v733
  %v738 = vmul.f32 %v734, %v734
  %v739 = vadd.f32 %v735, %v736
  %v740 = vadd.f32 %v739, %v737
  %v741 = vadd.f32 %v740, %v738
  %742 = vadd.xlane.f32.xlu0 %v741
  %v743 = vpop.xlane.xlu0 %742
  %v744 = vmul.f32 %v743, 0.001953125
  %v745 = vadd.f32 %v744, 1e-05
  %v746 = vrsqrt.pop %v745
  %v747 = vmul.f32 %v723, %v746
  %749 = vset.pattern.permute.xlu0 0
  %750 = vperm.xlu0 %749, %v747
  %v751 = vpop.permute.xlu0 %750
  %v753 = vmul.f32 %v731, %v751
  %v754 = vmul.f32 %v732, %v751
  %v755 = vmul.f32 %v733, %v751
  %v756 = vmul.f32 %v734, %v751
  %758 = vset.pattern.permute.xlu0 0
  %759 = vperm.xlu0 %758, %v724
  %v760 = vpop.permute.xlu0 %759
  %v762 = vadd.f32 %v753, %v760
  %v763 = vadd.f32 %v754, %v760
  %v764 = vadd.f32 %v755, %v760
  %v765 = vadd.f32 %v756, %v760
  %v766 = vmax.f32 %v762, 0.0
  %v767 = vmax.f32 %v763, 0.0
  %v768 = vmax.f32 %v764, 0.0
  %v769 = vmax.f32 %v765, 0.0
  %770 = vst [vmem:[%s9] sm:$0xff] %v766
  %771 = vst [vmem:[%s9 + $0x8] sm:$0xff] %v767
  %s772 = scalar_lea.vmem %s9, 16
  %773 = vst [vmem:[%s772] sm:$0xff] %v768
  %774 = vst [vmem:[%s772 + $0x8] sm:$0xff] %v769
  // Predicated region
  $region38: #{vgg_block.1} parent=0 // pred_check
    _
  $region39: #{vgg_block.1} parent=0 // pred_check_branch
    %776 = sbr.rel (0) target = $region41
  $region40: #{vgg_block.1} parent=0 // pred_region
    _
  $region41: #{vgg_block.1} parent=0 // pred_fallthru
    _
  // Predicated region
  $region42: #{vgg_block.1} parent=0 // pred_check
    _
  $region43: #{vgg_block.1} parent=0 // pred_check_branch
    %778 = sbr.rel (0) target = $region45
  $region44: #{vgg_block.1} parent=0 // pred_region
    _
  $region45: #{vgg_block.1} parent=0 // pred_fallthru
    _

</llo_original>
